<compile_context>
chip_gen: v5e
topology: v5e:2x2
jax: 0.10.0
libtpu: 0.0.40
codegen_flags: <defaults>
</compile_context>

<pallas_src>
import jax
import jax.numpy as jnp
from jax.experimental import pallas as pl
from jax.experimental.pallas import tpu as pltpu


# ----------------------------- Pallas kernel ---------------------------------
def _linear_kernel(x_ref, wt_ref, b_ref, o_ref):
    """o = x @ w_t + b for one (tm, H_in) row tile of x.

    x_ref : (tm, H_in)    activation tile, natural layout
    wt_ref: (H_in, H_out) resident pre-transposed weight
    b_ref : (1, H_out)    resident f32 bias row
    o_ref : (tm, H_out)   output tile, natural layout
    """
    x = x_ref[...]
    w = wt_ref[...]
    if x.dtype != w.dtype:
        # Promote the narrower operand (trace-time decision, in-register cast).
        dt = jnp.promote_types(x.dtype, w.dtype)
        x = x.astype(dt)
        w = w.astype(dt)
    acc = jnp.dot(x, w, preferred_element_type=jnp.float32)   # f32 accumulate on MXU
    o_ref[...] = (acc + b_ref[...]).astype(o_ref.dtype)       # f32 bias add, single cast


def pallas_linear(x2d, w_t, b_row, *, tile_rows):
    """y = x2d @ w_t + b_row, tiled along rows of x (sublane axis).

    x2d  : (M, H_in)      activations, natural layout (bf16 or f32)
    w_t  : (H_in, H_out)  pre-transposed weight
    b_row: (1, H_out)     f32 bias row
    Returns (M, H_out) in x2d.dtype.
    """
    M, H_in = x2d.shape
    H_out = w_t.shape[1]
    grid_m = pl.cdiv(M, tile_rows)   # partial last block is masked by Pallas: no jnp.pad

    x_bytes = jnp.dtype(x2d.dtype).itemsize
    w_bytes = jnp.dtype(w_t.dtype).itemsize
    cost = pl.CostEstimate(
        flops=2 * M * H_in * H_out,
        transcendentals=0,
        bytes_accessed=(x_bytes * M * H_in            # read x
                        + w_bytes * H_in * H_out      # read W^T (once)
                        + 4 * H_out                   # read bias (once)
                        + x_bytes * M * H_out),       # write y
    )

    return pl.pallas_call(
        _linear_kernel,
        out_shape=jax.ShapeDtypeStruct((M, H_out), x2d.dtype),
        grid_spec=pltpu.PrefetchScalarGridSpec(
            num_scalar_prefetch=0,
            grid=(grid_m,),
            in_specs=[
                # Activations: pipelined row tiles (full 32-wide rows, dense DMA).
                pl.BlockSpec((tile_rows, H_in), lambda i: (i, 0)),
                # Weight & bias: constant block index -> resident in VMEM,
                # DMA'd once for the whole grid.
                pl.BlockSpec((H_in, H_out), lambda i: (0, 0)),
                pl.BlockSpec((1, H_out), lambda i: (0, 0)),
            ],
            out_specs=pl.BlockSpec((tile_rows, H_out), lambda i: (i, 0)),
        ),
        compiler_params=pltpu.CompilerParams(
            # Independent row tiles: megacore sharding on v7x, harmless elsewhere.
            dimension_semantics=("parallel",),
        ),
        cost_estimate=cost,
    )(x2d, w_t, b_row)


# --------------------- Wrapped module (the "nn.Module") ----------------------
class LinearModule:
    """Stand-in for the wrapped torch nn.Module: nn.Linear(H, H) over last axis."""

    def __init__(self, hidden, key, *, param_dtype=jnp.bfloat16,
                 pallas_min_rows=128, single_block_rows=4096,
                 max_tile_rows=8192, tile_rows=None):
        k_w, k_b = jax.random.split(key)
        bound = 1.0 / jnp.sqrt(jnp.float32(hidden))
        # torch layout (out, in), kept for reference / interop.
        self.weight = jax.random.uniform(
            k_w, (hidden, hidden), jnp.float32, -bound, bound).astype(param_dtype)
        self.bias = jax.random.uniform(
            k_b, (hidden,), jnp.float32, -bound, bound)
        # Hoisted layout plumbing (once at init, never per call).
        self.weight_t = self.weight.T            # (in, out) layout the kernel consumes
        self.bias_row = self.bias.reshape(1, -1)  # f32 bias row
        # Dispatch / tiling knobs.
        # TODO(synk): re-benchmark pallas_min_rows on real hardware; with the
        # transpose/pad passes gone it can likely be lowered further.
        self.pallas_min_rows = pallas_min_rows
        self.single_block_rows = single_block_rows
        self.max_tile_rows = max_tile_rows
        self.tile_rows = tile_rows   # explicit override (testing / tuning)

    def _pick_tile(self, M):
        if self.tile_rows is not None:
            return self.tile_rows
        if M <= self.single_block_rows:
            # Whole problem as one resident block: no pipeline setup, no padding.
            return M
        # >= 2 blocks so ("parallel",) actually splits across v7x's two
        # TensorCores, with tiles big enough to amortize per-step overhead.
        half = -(-((M + 1) // 2) // 8) * 8          # ceil(M/2) rounded up to mult of 8
        return min(self.max_tile_rows, half)

    def __call__(self, x):
        lead, h = x.shape[:-1], x.shape[-1]
        x2d = x.reshape(-1, h)                      # no-copy reshape, no transpose
        M = x2d.shape[0]

        if M < self.pallas_min_rows:
            # Tiny problem: a pallas_call is pure launch overhead; let XLA fuse.
            y2d = x2d @ self.weight_t.astype(x2d.dtype) + self.bias.astype(x2d.dtype)
            return y2d.reshape(*lead, -1)

        y2d = pallas_linear(x2d, self.weight_t, self.bias_row,
                            tile_rows=self._pick_tile(M))
        return y2d.reshape(*lead, -1)


# ------------------------ The actual module under test -----------------------
class ModuleEnhanced:
    def project_parameters(self):
        pass

    @staticmethod
    def enhance(x):
        if isinstance(x, ModuleEnhanced):
            return x
        return _ModuleEnhancedWrapper(x)


class _ModuleEnhancedWrapper(ModuleEnhanced):
    """Pure delegation wrapper: forward(x) == self.module(x)."""

    def __init__(self, module):
        assert not isinstance(module, ModuleEnhanced)
        self.module = module

    def forward(self, x):
        return self.module(x)


# ----------------------------------- main -------------------------------------
if __name__ == "__main__":
    key = jax.random.PRNGKey(0)
    k_x, k_m, k_x2 = jax.random.split(key, 3)

    batch, seq, hidden = 2, 256, 32

    def ref(m, xv):
        xf = xv.astype(jnp.float32)
        wf = m.weight.astype(jnp.float32)
        return jnp.einsum("...i,oi->...o", xf, wf, precision="highest") + m.bias

    # --- Check 1: single resident block (M = 512 <= single_block_rows) -------
    x = jax.random.normal(k_x, (batch, seq, hidden), jnp.float32).astype(jnp.bfloat16)
    inner = LinearModule(hidden, k_m)
    wrapped = ModuleEnhanced.enhance(inner)
    y = jax.block_until_ready(wrapped.forward(x))
    y_ref = ref(inner, x)
    assert y.shape == (batch, seq, hidden)
    assert jnp.allclose(y.astype(jnp.float32), y_ref, atol=5e-2, rtol=5e-2)

    # --- Check 2: multi-block grid with a partial last tile (M=500, tm=128) --
    x2 = jax.random.normal(k_x2, (2, 250, hidden), jnp.float32).astype(jnp.bfloat16)
    inner_tiled = LinearModule(hidden, k_m, tile_rows=128)  # same key -> same params
    y2 = jax.block_until_ready(ModuleEnhanced.enhance(inner_tiled).forward(x2))
    y2_ref = ref(inner_tiled, x2)
    assert y2.shape == (2, 250, hidden)
    assert jnp.allclose(y2.astype(jnp.float32), y2_ref, atol=5e-2, rtol=5e-2)

    print("KERNEL_OK")
</pallas_src>

<mosaic_0001>
module attributes {stable_mosaic.version = 11 : i64} {
  func.func @_linear_kernel(%arg0: i32, %arg1: memref<512x32xbf16, #tpu.memory_space<vmem>>, %arg2: memref<32x32xbf16, #tpu.memory_space<vmem>>, %arg3: memref<1x32xf32, #tpu.memory_space<vmem>>, %arg4: memref<512x32xbf16, #tpu.memory_space<vmem>>) attributes {dimension_semantics = [#tpu.dimension_semantics<parallel>], iteration_bounds = array<i64: 1>, scalar_prefetch = 0 : i64, scratch_operands = 0 : i64, tpu.core_type = #tpu.core_type<tc>, window_params = [{transform_indices = @transform_0, window_bounds = array<i64: 512, 32>}, {pipeline_mode = #tpu.pipeline_mode<synchronous>, transform_indices = @transform_1, window_bounds = array<i64: 32, 32>}, {pipeline_mode = #tpu.pipeline_mode<synchronous>, transform_indices = @transform_2, window_bounds = array<i64: 1, 32>}, {transform_indices = @transform_3, window_bounds = array<i64: 512, 32>}]} {
    %c0 = arith.constant 0 : index
    %c0_0 = arith.constant 0 : index
    %0 = vector.load %arg1[%c0, %c0_0] : memref<512x32xbf16, #tpu.memory_space<vmem>>, vector<512x32xbf16>
    %c0_1 = arith.constant 0 : index
    %c0_2 = arith.constant 0 : index
    %1 = vector.load %arg2[%c0_1, %c0_2] : memref<32x32xbf16, #tpu.memory_space<vmem>>, vector<32x32xbf16>
    %cst = arith.constant dense<0.000000e+00> : vector<512x32xf32>
    %2 = tpu.matmul %0, %1, %cst {dimension_numbers = #tpu.dot_dimension_numbers<[1], [0], [0], [1], [0, 0, 1, 1], [], []>} : vector<512x32xbf16>, vector<32x32xbf16>, vector<512x32xf32> -> vector<512x32xf32>
    %c0_3 = arith.constant 0 : index
    %c0_4 = arith.constant 0 : index
    %3 = vector.load %arg3[%c0_3, %c0_4] : memref<1x32xf32, #tpu.memory_space<vmem>>, vector<1x32xf32>
    %4 = vector.broadcast %3 : vector<1x32xf32> to vector<512x32xf32>
    %5 = arith.addf %2, %4 : vector<512x32xf32>
    %6 = arith.truncf %5 : vector<512x32xf32> to vector<512x32xbf16>
    %c0_5 = arith.constant 0 : index
    %c0_6 = arith.constant 0 : index
    %7 = vector.load %arg4[%c0_5, %c0_6] : memref<512x32xbf16, #tpu.memory_space<vmem>>, vector<512x32xbf16>
    tpu.vector_store %arg4[%c0_5, %c0_6], %6 {strides = array<i32>} : memref<512x32xbf16, #tpu.memory_space<vmem>>, vector<512x32xbf16>,
    return
  }
  func.func @transform_0(%arg0: i32) -> (i32, i32) {
    %c0_i32 = arith.constant 0 : i32
    %c0_i32_0 = arith.constant 0 : i32
    return %arg0, %c0_i32 : i32, i32
  }
  func.func @transform_1(%arg0: i32) -> (i32, i32) {
    %c0_i32 = arith.constant 0 : i32
    %c0_i32_0 = arith.constant 0 : i32
    %c0_i32_1 = arith.constant 0 : i32
    return %c0_i32, %c0_i32_0 : i32, i32
  }
  func.func @transform_2(%arg0: i32) -> (i32, i32) {
    %c0_i32 = arith.constant 0 : i32
    %c0_i32_0 = arith.constant 0 : i32
    %c0_i32_1 = arith.constant 0 : i32
    return %c0_i32, %c0_i32_0 : i32, i32
  }
  func.func @transform_3(%arg0: i32) -> (i32, i32) {
    %c0_i32 = arith.constant 0 : i32
    %c0_i32_0 = arith.constant 0 : i32
    return %arg0, %c0_i32 : i32, i32
  }
}

</mosaic_0001>

<llo_original>
// kernel: tpu_custom_call.1
$region0: #{tpu_custom_call.1}
  #allocation0 [shape = 'u32[]', space=smem, size = 0x4, offset = 0x4, fixed_abs, tag = 'smem constant byte address 0x4 - core index']
  #allocation1 [shape = 'u32[72,128]{1,0:T(1,128)}', space=vmem, size = 0x9000, scoped, tag = 'internal scratch']
  %s0 = inlined_call_operand.vmem [shape: bf16[512,32], index: 0, kind: input, shape index: {}]
  %s1 = inlined_call_operand.vmem [shape: bf16[32,32], index: 1, kind: input, shape index: {}]
  %s2 = inlined_call_operand.vmem [shape: f32[1,32], index: 2, kind: input, shape index: {}]
  %s3 = inlined_call_operand.vmem [shape: bf16[512,32], index: 3, kind: output, shape index: {}]
  %s4 = sld [smem:[#allocation0]]
  $region22: #{tpu_custom_call.1} parent=0
    _
  %s6 = ssub.s32 1, %s4
  %s7 = scalar_select 0, %s6, %s4
  // Predicated region
  $region2: #{tpu_custom_call.1} parent=0 // pred_check
    _
  $region3: #{tpu_custom_call.1} parent=0 // pred_check_branch
    %9 = sbr.rel (0) target = $region5
  $region4: #{tpu_custom_call.1} parent=0 // pred_region
    _
  $region5: #{tpu_custom_call.1} parent=0 // pred_fallthru
    _
  // Predicated region
  $region6: #{tpu_custom_call.1} parent=0 // pred_check
    _
  $region7: #{tpu_custom_call.1} parent=0 // pred_check_branch
    %11 = sbr.rel (0) target = $region9
  $region8: #{tpu_custom_call.1} parent=0 // pred_region
    _
  $region9: #{tpu_custom_call.1} parent=0 // pred_fallthru
    _
  // Predicated region
  $region10: #{tpu_custom_call.1} parent=0 // pred_check
    _
  $region11: #{tpu_custom_call.1} parent=0 // pred_check_branch
    %13 = sbr.rel (0) target = $region13
  $region12: #{tpu_custom_call.1} parent=0 // pred_region
    _
  $region13: #{tpu_custom_call.1} parent=0 // pred_fallthru
    _
  %v15 = vld [vmem:[%s0] sm:$0xf]
  %v16 = vld [vmem:[%s0 + $0x4] sm:$0xf]
  %v17 = vld [vmem:[%s0 + $0x8] sm:$0xf]
  %v18 = vld [vmem:[%s0 + $0xc] sm:$0xf]
  %v19 = vld [vmem:[%s0 + $0x10] sm:$0xf]
  %v20 = vld [vmem:[%s0 + $0x14] sm:$0xf]
  %v21 = vld [vmem:[%s0 + $0x18] sm:$0xf]
  %v22 = vld [vmem:[%s0 + $0x1c] sm:$0xf]
  %v23 = vld [vmem:[%s0 + $0x20] sm:$0xf]
  %v24 = vld [vmem:[%s0 + $0x24] sm:$0xf]
  %v25 = vld [vmem:[%s0 + $0x28] sm:$0xf]
  %v26 = vld [vmem:[%s0 + $0x2c] sm:$0xf]
  %v27 = vld [vmem:[%s0 + $0x30] sm:$0xf]
  %v28 = vld [vmem:[%s0 + $0x34] sm:$0xf]
  %v29 = vld [vmem:[%s0 + $0x38] sm:$0xf]
  %v30 = vld [vmem:[%s0 + $0x3c] sm:$0xf]
  %v31 = vld [vmem:[%s0 + $0x40] sm:$0xf]
  %v32 = vld [vmem:[%s0 + $0x44] sm:$0xf]
  %v33 = vld [vmem:[%s0 + $0x48] sm:$0xf]
  %v34 = vld [vmem:[%s0 + $0x4c] sm:$0xf]
  %v35 = vld [vmem:[%s0 + $0x50] sm:$0xf]
  %v36 = vld [vmem:[%s0 + $0x54] sm:$0xf]
  %v37 = vld [vmem:[%s0 + $0x58] sm:$0xf]
  %v38 = vld [vmem:[%s0 + $0x5c] sm:$0xf]
  %v39 = vld [vmem:[%s0 + $0x60] sm:$0xf]
  %v40 = vld [vmem:[%s0 + $0x64] sm:$0xf]
  %v41 = vld [vmem:[%s0 + $0x68] sm:$0xf]
  %v42 = vld [vmem:[%s0 + $0x6c] sm:$0xf]
  %v43 = vld [vmem:[%s0 + $0x70] sm:$0xf]
  %v44 = vld [vmem:[%s0 + $0x74] sm:$0xf]
  %v45 = vld [vmem:[%s0 + $0x78] sm:$0xf]
  %v46 = vld [vmem:[%s0 + $0x7c] sm:$0xf]
  %v47 = vld [vmem:[%s0 + $0x80] sm:$0xf]
  %v48 = vld [vmem:[%s0 + $0x84] sm:$0xf]
  %v49 = vld [vmem:[%s0 + $0x88] sm:$0xf]
  %v50 = vld [vmem:[%s0 + $0x8c] sm:$0xf]
  %v51 = vld [vmem:[%s0 + $0x90] sm:$0xf]
  %v52 = vld [vmem:[%s0 + $0x94] sm:$0xf]
  %v53 = vld [vmem:[%s0 + $0x98] sm:$0xf]
  %v54 = vld [vmem:[%s0 + $0x9c] sm:$0xf]
  %v55 = vld [vmem:[%s0 + $0xa0] sm:$0xf]
  %v56 = vld [vmem:[%s0 + $0xa4] sm:$0xf]
  %v57 = vld [vmem:[%s0 + $0xa8] sm:$0xf]
  %v58 = vld [vmem:[%s0 + $0xac] sm:$0xf]
  %v59 = vld [vmem:[%s0 + $0xb0] sm:$0xf]
  %v60 = vld [vmem:[%s0 + $0xb4] sm:$0xf]
  %v61 = vld [vmem:[%s0 + $0xb8] sm:$0xf]
  %v62 = vld [vmem:[%s0 + $0xbc] sm:$0xf]
  %v63 = vld [vmem:[%s0 + $0xc0] sm:$0xf]
  %v64 = vld [vmem:[%s0 + $0xc4] sm:$0xf]
  %v65 = vld [vmem:[%s0 + $0xc8] sm:$0xf]
  %v66 = vld [vmem:[%s0 + $0xcc] sm:$0xf]
  %v67 = vld [vmem:[%s0 + $0xd0] sm:$0xf]
  %v68 = vld [vmem:[%s0 + $0xd4] sm:$0xf]
  %v69 = vld [vmem:[%s0 + $0xd8] sm:$0xf]
  %v70 = vld [vmem:[%s0 + $0xdc] sm:$0xf]
  %v71 = vld [vmem:[%s0 + $0xe0] sm:$0xf]
  %v72 = vld [vmem:[%s0 + $0xe4] sm:$0xf]
  %v73 = vld [vmem:[%s0 + $0xe8] sm:$0xf]
  %v74 = vld [vmem:[%s0 + $0xec] sm:$0xf]
  %v75 = vld [vmem:[%s0 + $0xf0] sm:$0xf]
  %v76 = vld [vmem:[%s0 + $0xf4] sm:$0xf]
  %v77 = vld [vmem:[%s0 + $0xf8] sm:$0xf]
  %v78 = vld [vmem:[%s0 + $0xfc] sm:$0xf]
  %v79 = vld [vmem:[%s1] sm:$0xf]
  %v80 = vld [vmem:[%s1 + $0x4] sm:$0xf]
  %v81 = vld [vmem:[%s1 + $0x8] sm:$0xf]
  %v82 = vld [vmem:[%s1 + $0xc] sm:$0xf]
  %v83 = vld [vmem:[%s2] sm:$0x1]
  %v85 = vperm.slane %v83, 0
  %v151 = vunpack.c.l.b16 %v15
  %v152 = vunpack.c.l.b16 %v16
  %v153 = vunpack.c.l.b16 %v17
  %v154 = vunpack.c.l.b16 %v18
  %v155 = vunpack.c.l.b16 %v19
  %v156 = vunpack.c.l.b16 %v20
  %v157 = vunpack.c.l.b16 %v21
  %v158 = vunpack.c.l.b16 %v22
  %v159 = vunpack.c.l.b16 %v23
  %v160 = vunpack.c.l.b16 %v24
  %v161 = vunpack.c.l.b16 %v25
  %v162 = vunpack.c.l.b16 %v26
  %v163 = vunpack.c.l.b16 %v27
  %v164 = vunpack.c.l.b16 %v28
  %v165 = vunpack.c.l.b16 %v29
  %v166 = vunpack.c.l.b16 %v30
  %v167 = vunpack.c.l.b16 %v31
  %v168 = vunpack.c.l.b16 %v32
  %v169 = vunpack.c.l.b16 %v33
  %v170 = vunpack.c.l.b16 %v34
  %v171 = vunpack.c.l.b16 %v35
  %v172 = vunpack.c.l.b16 %v36
  %v173 = vunpack.c.l.b16 %v37
  %v174 = vunpack.c.l.b16 %v38
  %v175 = vunpack.c.l.b16 %v39
  %v176 = vunpack.c.l.b16 %v40
  %v177 = vunpack.c.l.b16 %v41
  %v178 = vunpack.c.l.b16 %v42
  %v179 = vunpack.c.l.b16 %v43
  %v180 = vunpack.c.l.b16 %v44
  %v181 = vunpack.c.l.b16 %v45
  %v182 = vunpack.c.l.b16 %v46
  %v183 = vunpack.c.l.b16 %v47
  %v184 = vunpack.c.l.b16 %v48
  %v185 = vunpack.c.l.b16 %v49
  %v186 = vunpack.c.l.b16 %v50
  %v187 = vunpack.c.l.b16 %v51
  %v188 = vunpack.c.l.b16 %v52
  %v189 = vunpack.c.l.b16 %v53
  %v190 = vunpack.c.l.b16 %v54
  %v191 = vunpack.c.l.b16 %v55
  %v192 = vunpack.c.l.b16 %v56
  %v193 = vunpack.c.l.b16 %v57
  %v194 = vunpack.c.l.b16 %v58
  %v195 = vunpack.c.l.b16 %v59
  %v196 = vunpack.c.l.b16 %v60
  %v197 = vunpack.c.l.b16 %v61
  %v198 = vunpack.c.l.b16 %v62
  %v199 = vunpack.c.l.b16 %v63
  %v200 = vunpack.c.l.b16 %v64
  %v201 = vunpack.c.l.b16 %v65
  %v202 = vunpack.c.l.b16 %v66
  %v203 = vunpack.c.l.b16 %v67
  %v204 = vunpack.c.l.b16 %v68
  %v205 = vunpack.c.l.b16 %v69
  %v206 = vunpack.c.l.b16 %v70
  %v207 = vunpack.c.l.b16 %v71
  %v208 = vunpack.c.l.b16 %v72
  %v209 = vunpack.c.l.b16 %v73
  %v210 = vunpack.c.l.b16 %v74
  %v211 = vunpack.c.l.b16 %v75
  %v212 = vunpack.c.l.b16 %v76
  %v213 = vunpack.c.l.b16 %v77
  %v214 = vunpack.c.l.b16 %v78
  %v215 = vpack.c.b16 %v152, %v151
  %v216 = vpack.c.b16 %v154, %v153
  %v217 = vpack.c.b16 %v156, %v155
  %v218 = vpack.c.b16 %v158, %v157
  %v219 = vpack.c.b16 %v160, %v159
  %v220 = vpack.c.b16 %v162, %v161
  %v221 = vpack.c.b16 %v164, %v163
  %v222 = vpack.c.b16 %v166, %v165
  %v223 = vpack.c.b16 %v168, %v167
  %v224 = vpack.c.b16 %v170, %v169
  %v225 = vpack.c.b16 %v172, %v171
  %v226 = vpack.c.b16 %v174, %v173
  %v227 = vpack.c.b16 %v176, %v175
  %v228 = vpack.c.b16 %v178, %v177
  %v229 = vpack.c.b16 %v180, %v179
  %v230 = vpack.c.b16 %v182, %v181
  %v231 = vpack.c.b16 %v184, %v183
  %v232 = vpack.c.b16 %v186, %v185
  %v233 = vpack.c.b16 %v188, %v187
  %v234 = vpack.c.b16 %v190, %v189
  %v235 = vpack.c.b16 %v192, %v191
  %v236 = vpack.c.b16 %v194, %v193
  %v237 = vpack.c.b16 %v196, %v195
  %v238 = vpack.c.b16 %v198, %v197
  %v239 = vpack.c.b16 %v200, %v199
  %v240 = vpack.c.b16 %v202, %v201
  %v241 = vpack.c.b16 %v204, %v203
  %v242 = vpack.c.b16 %v206, %v205
  %v243 = vpack.c.b16 %v208, %v207
  %v244 = vpack.c.b16 %v210, %v209
  %v245 = vpack.c.b16 %v212, %v211
  %v246 = vpack.c.b16 %v214, %v213
  %v251 = vunpack.c.l.b16 %v79
  %v252 = vunpack.c.l.b16 %v80
  %v253 = vunpack.c.l.b16 %v81
  %v254 = vunpack.c.l.b16 %v82
  %v255 = vpack.c.b16 %v252, %v251
  %v256 = vpack.c.b16 %v254, %v253
  %vm259 = vcmask 261120
  %v261 = vsel %vm259, %v215, 0
  %v264 = vsel %vm259, %v216, 0
  %v267 = vsel %vm259, %v217, 0
  %v270 = vsel %vm259, %v218, 0
  %v273 = vsel %vm259, %v219, 0
  %v276 = vsel %vm259, %v220, 0
  %v279 = vsel %vm259, %v221, 0
  %v282 = vsel %vm259, %v222, 0
  %v285 = vsel %vm259, %v223, 0
  %v288 = vsel %vm259, %v224, 0
  %v291 = vsel %vm259, %v225, 0
  %v294 = vsel %vm259, %v226, 0
  %v297 = vsel %vm259, %v227, 0
  %v300 = vsel %vm259, %v228, 0
  %v303 = vsel %vm259, %v229, 0
  %v306 = vsel %vm259, %v230, 0
  %v309 = vsel %vm259, %v231, 0
  %v312 = vsel %vm259, %v232, 0
  %v315 = vsel %vm259, %v233, 0
  %v318 = vsel %vm259, %v234, 0
  %v321 = vsel %vm259, %v235, 0
  %v324 = vsel %vm259, %v236, 0
  %v327 = vsel %vm259, %v237, 0
  %v330 = vsel %vm259, %v238, 0
  %v333 = vsel %vm259, %v239, 0
  %v336 = vsel %vm259, %v240, 0
  %v339 = vsel %vm259, %v241, 0
  %v342 = vsel %vm259, %v242, 0
  %v345 = vsel %vm259, %v243, 0
  %v348 = vsel %vm259, %v244, 0
  %v351 = vsel %vm259, %v245, 0
  %v354 = vsel %vm259, %v246, 0
  %356 = vmatpush.bf16.msra.mxu0 0
  %357 = vmatpush.bf16.msra.mxu0 0
  %358 = vmatpush.bf16.msra.mxu0 0
  %359 = vmatpush.bf16.msra.mxu0 0
  %360 = vmatpush.bf16.msra.mxu0 0
  %361 = vmatpush.bf16.msra.mxu0 0
  %362 = vmatpush.bf16.msra.mxu0 %v256
  %363 = vmatpush.bf16.msra.mxu0 %v255
  %364 = vmatmul.bf16.gmra.mxu0 %v261
  %v365 = vpop.f32.mrf.mxu0
  %v366 = vadd.f32 %v85, %v365
  %v367 = vpop.f32.mrf.mxu0
  %v368 = vadd.f32 %v85, %v367
  %369 = vmatmul.bf16.gmra.mxu0 %v264
  %v370 = vpop.f32.mrf.mxu0
  %v371 = vadd.f32 %v85, %v370
  %v372 = vpop.f32.mrf.mxu0
  %v373 = vadd.f32 %v85, %v372
  %374 = vmatmul.bf16.gmra.mxu0 %v267
  %v375 = vpop.f32.mrf.mxu0
  %v376 = vadd.f32 %v85, %v375
  %v377 = vpop.f32.mrf.mxu0
  %v378 = vadd.f32 %v85, %v377
  %379 = vmatmul.bf16.gmra.mxu0 %v270
  %v380 = vpop.f32.mrf.mxu0
  %v381 = vadd.f32 %v85, %v380
  %v382 = vpop.f32.mrf.mxu0
  %v383 = vadd.f32 %v85, %v382
  %384 = vmatmul.bf16.gmra.mxu0 %v273
  %v385 = vpop.f32.mrf.mxu0
  %v386 = vadd.f32 %v85, %v385
  %v387 = vpop.f32.mrf.mxu0
  %v388 = vadd.f32 %v85, %v387
  %389 = vmatmul.bf16.gmra.mxu0 %v276
  %v390 = vpop.f32.mrf.mxu0
  %v391 = vadd.f32 %v85, %v390
  %v392 = vpop.f32.mrf.mxu0
  %v393 = vadd.f32 %v85, %v392
  %394 = vmatmul.bf16.gmra.mxu0 %v279
  %v395 = vpop.f32.mrf.mxu0
  %v396 = vadd.f32 %v85, %v395
  %v397 = vpop.f32.mrf.mxu0
  %v398 = vadd.f32 %v85, %v397
  %399 = vmatmul.bf16.gmra.mxu0 %v282
  %v400 = vpop.f32.mrf.mxu0
  %v401 = vadd.f32 %v85, %v400
  %v402 = vpop.f32.mrf.mxu0
  %v403 = vadd.f32 %v85, %v402
  %404 = vmatmul.bf16.gmra.mxu0 %v285
  %v405 = vpop.f32.mrf.mxu0
  %v406 = vadd.f32 %v85, %v405
  %v407 = vpop.f32.mrf.mxu0
  %v408 = vadd.f32 %v85, %v407
  %409 = vmatmul.bf16.gmra.mxu0 %v288
  %v410 = vpop.f32.mrf.mxu0
  %v411 = vadd.f32 %v85, %v410
  %v412 = vpop.f32.mrf.mxu0
  %v413 = vadd.f32 %v85, %v412
  %414 = vmatmul.bf16.gmra.mxu0 %v291
  %v415 = vpop.f32.mrf.mxu0
  %v416 = vadd.f32 %v85, %v415
  %v417 = vpop.f32.mrf.mxu0
  %v418 = vadd.f32 %v85, %v417
  %419 = vmatmul.bf16.gmra.mxu0 %v294
  %v420 = vpop.f32.mrf.mxu0
  %v421 = vadd.f32 %v85, %v420
  %v422 = vpop.f32.mrf.mxu0
  %v423 = vadd.f32 %v85, %v422
  %424 = vmatmul.bf16.gmra.mxu0 %v297
  %v425 = vpop.f32.mrf.mxu0
  %v426 = vadd.f32 %v85, %v425
  %v427 = vpop.f32.mrf.mxu0
  %v428 = vadd.f32 %v85, %v427
  %429 = vmatmul.bf16.gmra.mxu0 %v300
  %v430 = vpop.f32.mrf.mxu0
  %v431 = vadd.f32 %v85, %v430
  %v432 = vpop.f32.mrf.mxu0
  %v433 = vadd.f32 %v85, %v432
  %434 = vmatmul.bf16.gmra.mxu0 %v303
  %v435 = vpop.f32.mrf.mxu0
  %v436 = vadd.f32 %v85, %v435
  %v437 = vpop.f32.mrf.mxu0
  %v438 = vadd.f32 %v85, %v437
  %439 = vmatmul.bf16.gmra.mxu0 %v306
  %v440 = vpop.f32.mrf.mxu0
  %v441 = vadd.f32 %v85, %v440
  %v442 = vpop.f32.mrf.mxu0
  %v443 = vadd.f32 %v85, %v442
  %444 = vmatmul.bf16.gmra.mxu0 %v309
  %v445 = vpop.f32.mrf.mxu0
  %v446 = vadd.f32 %v85, %v445
  %v447 = vpop.f32.mrf.mxu0
  %v448 = vadd.f32 %v85, %v447
  %449 = vmatmul.bf16.gmra.mxu0 %v312
  %v450 = vpop.f32.mrf.mxu0
  %v451 = vadd.f32 %v85, %v450
  %v452 = vpop.f32.mrf.mxu0
  %v453 = vadd.f32 %v85, %v452
  %454 = vmatmul.bf16.gmra.mxu0 %v315
  %v455 = vpop.f32.mrf.mxu0
  %v456 = vadd.f32 %v85, %v455
  %v457 = vpop.f32.mrf.mxu0
  %v458 = vadd.f32 %v85, %v457
  %459 = vmatmul.bf16.gmra.mxu0 %v318
  %v460 = vpop.f32.mrf.mxu0
  %v461 = vadd.f32 %v85, %v460
  %v462 = vpop.f32.mrf.mxu0
  %v463 = vadd.f32 %v85, %v462
  %464 = vmatmul.bf16.gmra.mxu0 %v321
  %v465 = vpop.f32.mrf.mxu0
  %v466 = vadd.f32 %v85, %v465
  %v467 = vpop.f32.mrf.mxu0
  %v468 = vadd.f32 %v85, %v467
  %469 = vmatmul.bf16.gmra.mxu0 %v324
  %v470 = vpop.f32.mrf.mxu0
  %v471 = vadd.f32 %v85, %v470
  %v472 = vpop.f32.mrf.mxu0
  %v473 = vadd.f32 %v85, %v472
  %474 = vmatmul.bf16.gmra.mxu0 %v327
  %v475 = vpop.f32.mrf.mxu0
  %v476 = vadd.f32 %v85, %v475
  %v477 = vpop.f32.mrf.mxu0
  %v478 = vadd.f32 %v85, %v477
  %479 = vmatmul.bf16.gmra.mxu0 %v330
  %v480 = vpop.f32.mrf.mxu0
  %v481 = vadd.f32 %v85, %v480
  %v482 = vpop.f32.mrf.mxu0
  %v483 = vadd.f32 %v85, %v482
  %484 = vmatmul.bf16.gmra.mxu0 %v333
  %v485 = vpop.f32.mrf.mxu0
  %v486 = vadd.f32 %v85, %v485
  %v487 = vpop.f32.mrf.mxu0
  %v488 = vadd.f32 %v85, %v487
  %489 = vmatmul.bf16.gmra.mxu0 %v336
  %v490 = vpop.f32.mrf.mxu0
  %v491 = vadd.f32 %v85, %v490
  %v492 = vpop.f32.mrf.mxu0
  %v493 = vadd.f32 %v85, %v492
  %494 = vmatmul.bf16.gmra.mxu0 %v339
  %v495 = vpop.f32.mrf.mxu0
  %v496 = vadd.f32 %v85, %v495
  %v497 = vpop.f32.mrf.mxu0
  %v498 = vadd.f32 %v85, %v497
  %499 = vmatmul.bf16.gmra.mxu0 %v342
  %v500 = vpop.f32.mrf.mxu0
  %v501 = vadd.f32 %v85, %v500
  %v502 = vpop.f32.mrf.mxu0
  %v503 = vadd.f32 %v85, %v502
  %504 = vmatmul.bf16.gmra.mxu0 %v345
  %v505 = vpop.f32.mrf.mxu0
  %v506 = vadd.f32 %v85, %v505
  %v507 = vpop.f32.mrf.mxu0
  %v508 = vadd.f32 %v85, %v507
  %509 = vmatmul.bf16.gmra.mxu0 %v348
  %v510 = vpop.f32.mrf.mxu0
  %v511 = vadd.f32 %v85, %v510
  %v512 = vpop.f32.mrf.mxu0
  %v513 = vadd.f32 %v85, %v512
  %514 = vmatmul.bf16.gmra.mxu0 %v351
  %v515 = vpop.f32.mrf.mxu0
  %v516 = vadd.f32 %v85, %v515
  %v517 = vpop.f32.mrf.mxu0
  %v518 = vadd.f32 %v85, %v517
  %519 = vmatmul.bf16.gmra.mxu0 %v354
  %v520 = vpop.f32.mrf.mxu0
  %v521 = vadd.f32 %v85, %v520
  %v522 = vpop.f32.mrf.mxu0
  %v523 = vadd.f32 %v85, %v522
  %524 = vdwg.mxu0
  %v525 = vpack.c.bf16 %v366, %v366
  %v526 = vpack.c.bf16 %v368, %v368
  %v527 = vpack.c.bf16 %v371, %v371
  %v528 = vpack.c.bf16 %v373, %v373
  %v529 = vpack.c.bf16 %v376, %v376
  %v530 = vpack.c.bf16 %v378, %v378
  %v531 = vpack.c.bf16 %v381, %v381
  %v532 = vpack.c.bf16 %v383, %v383
  %v533 = vpack.c.bf16 %v386, %v386
  %v534 = vpack.c.bf16 %v388, %v388
  %v535 = vpack.c.bf16 %v391, %v391
  %v536 = vpack.c.bf16 %v393, %v393
  %v537 = vpack.c.bf16 %v396, %v396
  %v538 = vpack.c.bf16 %v398, %v398
  %v539 = vpack.c.bf16 %v401, %v401
  %v540 = vpack.c.bf16 %v403, %v403
  %v541 = vpack.c.bf16 %v406, %v406
  %v542 = vpack.c.bf16 %v408, %v408
  %v543 = vpack.c.bf16 %v411, %v411
  %v544 = vpack.c.bf16 %v413, %v413
  %v545 = vpack.c.bf16 %v416, %v416
  %v546 = vpack.c.bf16 %v418, %v418
  %v547 = vpack.c.bf16 %v421, %v421
  %v548 = vpack.c.bf16 %v423, %v423
  %v549 = vpack.c.bf16 %v426, %v426
  %v550 = vpack.c.bf16 %v428, %v428
  %v551 = vpack.c.bf16 %v431, %v431
  %v552 = vpack.c.bf16 %v433, %v433
  %v553 = vpack.c.bf16 %v436, %v436
  %v554 = vpack.c.bf16 %v438, %v438
  %v555 = vpack.c.bf16 %v441, %v441
  %v556 = vpack.c.bf16 %v443, %v443
  %v557 = vpack.c.bf16 %v446, %v446
  %v558 = vpack.c.bf16 %v448, %v448
  %v559 = vpack.c.bf16 %v451, %v451
  %v560 = vpack.c.bf16 %v453, %v453
  %v561 = vpack.c.bf16 %v456, %v456
  %v562 = vpack.c.bf16 %v458, %v458
  %v563 = vpack.c.bf16 %v461, %v461
  %v564 = vpack.c.bf16 %v463, %v463
  %v565 = vpack.c.bf16 %v466, %v466
  %v566 = vpack.c.bf16 %v468, %v468
  %v567 = vpack.c.bf16 %v471, %v471
  %v568 = vpack.c.bf16 %v473, %v473
  %v569 = vpack.c.bf16 %v476, %v476
  %v570 = vpack.c.bf16 %v478, %v478
  %v571 = vpack.c.bf16 %v481, %v481
  %v572 = vpack.c.bf16 %v483, %v483
  %v573 = vpack.c.bf16 %v486, %v486
  %v574 = vpack.c.bf16 %v488, %v488
  %v575 = vpack.c.bf16 %v491, %v491
  %v576 = vpack.c.bf16 %v493, %v493
  %v577 = vpack.c.bf16 %v496, %v496
  %v578 = vpack.c.bf16 %v498, %v498
  %v579 = vpack.c.bf16 %v501, %v501
  %v580 = vpack.c.bf16 %v503, %v503
  %v581 = vpack.c.bf16 %v506, %v506
  %v582 = vpack.c.bf16 %v508, %v508
  %v583 = vpack.c.bf16 %v511, %v511
  %v584 = vpack.c.bf16 %v513, %v513
  %v585 = vpack.c.bf16 %v516, %v516
  %v586 = vpack.c.bf16 %v518, %v518
  %v587 = vpack.c.bf16 %v521, %v521
  %v588 = vpack.c.bf16 %v523, %v523
  %vm589 = vcmask 257024
  %590 = vst.msk [vmem:[%s3] sm:$0xf] %vm589, %v525
  %591 = vst.msk [vmem:[%s3 + $0x4] sm:$0xf] %vm589, %v526
  %592 = vst.msk [vmem:[%s3 + $0x8] sm:$0xf] %vm589, %v527
  %593 = vst.msk [vmem:[%s3 + $0xc] sm:$0xf] %vm589, %v528
  %594 = vst.msk [vmem:[%s3 + $0x10] sm:$0xf] %vm589, %v529
  %595 = vst.msk [vmem:[%s3 + $0x14] sm:$0xf] %vm589, %v530
  %596 = vst.msk [vmem:[%s3 + $0x18] sm:$0xf] %vm589, %v531
  %597 = vst.msk [vmem:[%s3 + $0x1c] sm:$0xf] %vm589, %v532
  %598 = vst.msk [vmem:[%s3 + $0x20] sm:$0xf] %vm589, %v533
  %599 = vst.msk [vmem:[%s3 + $0x24] sm:$0xf] %vm589, %v534
  %600 = vst.msk [vmem:[%s3 + $0x28] sm:$0xf] %vm589, %v535
  %601 = vst.msk [vmem:[%s3 + $0x2c] sm:$0xf] %vm589, %v536
  %602 = vst.msk [vmem:[%s3 + $0x30] sm:$0xf] %vm589, %v537
  %603 = vst.msk [vmem:[%s3 + $0x34] sm:$0xf] %vm589, %v538
  %604 = vst.msk [vmem:[%s3 + $0x38] sm:$0xf] %vm589, %v539
  %605 = vst.msk [vmem:[%s3 + $0x3c] sm:$0xf] %vm589, %v540
  %606 = vst.msk [vmem:[%s3 + $0x40] sm:$0xf] %vm589, %v541
  %607 = vst.msk [vmem:[%s3 + $0x44] sm:$0xf] %vm589, %v542
  %608 = vst.msk [vmem:[%s3 + $0x48] sm:$0xf] %vm589, %v543
  %609 = vst.msk [vmem:[%s3 + $0x4c] sm:$0xf] %vm589, %v544
  %610 = vst.msk [vmem:[%s3 + $0x50] sm:$0xf] %vm589, %v545
  %611 = vst.msk [vmem:[%s3 + $0x54] sm:$0xf] %vm589, %v546
  %612 = vst.msk [vmem:[%s3 + $0x58] sm:$0xf] %vm589, %v547
  %613 = vst.msk [vmem:[%s3 + $0x5c] sm:$0xf] %vm589, %v548
  %614 = vst.msk [vmem:[%s3 + $0x60] sm:$0xf] %vm589, %v549
  %615 = vst.msk [vmem:[%s3 + $0x64] sm:$0xf] %vm589, %v550
  %616 = vst.msk [vmem:[%s3 + $0x68] sm:$0xf] %vm589, %v551
  %617 = vst.msk [vmem:[%s3 + $0x6c] sm:$0xf] %vm589, %v552
  %618 = vst.msk [vmem:[%s3 + $0x70] sm:$0xf] %vm589, %v553
  %619 = vst.msk [vmem:[%s3 + $0x74] sm:$0xf] %vm589, %v554
  %620 = vst.msk [vmem:[%s3 + $0x78] sm:$0xf] %vm589, %v555
  %621 = vst.msk [vmem:[%s3 + $0x7c] sm:$0xf] %vm589, %v556
  %622 = vst.msk [vmem:[%s3 + $0x80] sm:$0xf] %vm589, %v557
  %623 = vst.msk [vmem:[%s3 + $0x84] sm:$0xf] %vm589, %v558
  %624 = vst.msk [vmem:[%s3 + $0x88] sm:$0xf] %vm589, %v559
  %625 = vst.msk [vmem:[%s3 + $0x8c] sm:$0xf] %vm589, %v560
  %626 = vst.msk [vmem:[%s3 + $0x90] sm:$0xf] %vm589, %v561
  %627 = vst.msk [vmem:[%s3 + $0x94] sm:$0xf] %vm589, %v562
  %628 = vst.msk [vmem:[%s3 + $0x98] sm:$0xf] %vm589, %v563
  %629 = vst.msk [vmem:[%s3 + $0x9c] sm:$0xf] %vm589, %v564
  %630 = vst.msk [vmem:[%s3 + $0xa0] sm:$0xf] %vm589, %v565
  %631 = vst.msk [vmem:[%s3 + $0xa4] sm:$0xf] %vm589, %v566
  %632 = vst.msk [vmem:[%s3 + $0xa8] sm:$0xf] %vm589, %v567
  %633 = vst.msk [vmem:[%s3 + $0xac] sm:$0xf] %vm589, %v568
  %634 = vst.msk [vmem:[%s3 + $0xb0] sm:$0xf] %vm589, %v569
  %635 = vst.msk [vmem:[%s3 + $0xb4] sm:$0xf] %vm589, %v570
  %636 = vst.msk [vmem:[%s3 + $0xb8] sm:$0xf] %vm589, %v571
  %637 = vst.msk [vmem:[%s3 + $0xbc] sm:$0xf] %vm589, %v572
  %638 = vst.msk [vmem:[%s3 + $0xc0] sm:$0xf] %vm589, %v573
  %639 = vst.msk [vmem:[%s3 + $0xc4] sm:$0xf] %vm589, %v574
  %640 = vst.msk [vmem:[%s3 + $0xc8] sm:$0xf] %vm589, %v575
  %641 = vst.msk [vmem:[%s3 + $0xcc] sm:$0xf] %vm589, %v576
  %642 = vst.msk [vmem:[%s3 + $0xd0] sm:$0xf] %vm589, %v577
  %643 = vst.msk [vmem:[%s3 + $0xd4] sm:$0xf] %vm589, %v578
  %644 = vst.msk [vmem:[%s3 + $0xd8] sm:$0xf] %vm589, %v579
  %645 = vst.msk [vmem:[%s3 + $0xdc] sm:$0xf] %vm589, %v580
  %646 = vst.msk [vmem:[%s3 + $0xe0] sm:$0xf] %vm589, %v581
  %647 = vst.msk [vmem:[%s3 + $0xe4] sm:$0xf] %vm589, %v582
  %648 = vst.msk [vmem:[%s3 + $0xe8] sm:$0xf] %vm589, %v583
  %649 = vst.msk [vmem:[%s3 + $0xec] sm:$0xf] %vm589, %v584
  %650 = vst.msk [vmem:[%s3 + $0xf0] sm:$0xf] %vm589, %v585
  %651 = vst.msk [vmem:[%s3 + $0xf4] sm:$0xf] %vm589, %v586
  %652 = vst.msk [vmem:[%s3 + $0xf8] sm:$0xf] %vm589, %v587
  %653 = vst.msk [vmem:[%s3 + $0xfc] sm:$0xf] %vm589, %v588
  // Predicated region
  $region14: #{tpu_custom_call.1} parent=0 // pred_check
    _
  $region15: #{tpu_custom_call.1} parent=0 // pred_check_branch
    %655 = sbr.rel (0) target = $region17
  $region16: #{tpu_custom_call.1} parent=0 // pred_region
    _
  $region17: #{tpu_custom_call.1} parent=0 // pred_fallthru
    _
  // Predicated region
  $region18: #{tpu_custom_call.1} parent=0 // pred_check
    _
  $region19: #{tpu_custom_call.1} parent=0 // pred_check_branch
    %657 = sbr.rel (0) target = $region21
  $region20: #{tpu_custom_call.1} parent=0 // pred_region
    _
  $region21: #{tpu_custom_call.1} parent=0 // pred_fallthru
    _

</llo_original>
